<compile_context>
chip_gen: v5e
topology: v5e:2x2
jax: 0.10.0
libtpu: 0.0.40
codegen_flags: <defaults>
</compile_context>

<pallas_src>
import functools

import jax
import jax.numpy as jnp
from jax.experimental import pallas as pl
from jax.experimental.pallas import tpu as pltpu

_BN_EPS = 1e-5
_VMEM = pl.BlockSpec(memory_space=pltpu.MemorySpace.VMEM)


# ----------------------------------------------------------------------------
# Fused kernel.  Activations live as (C, P) with P = N*H*W on the lane axis.
# ----------------------------------------------------------------------------
def _segmenter_kernel(h, w, x_ref, w2_ref, pp_ref, o_ref):
    n, c, hw = x_ref.shape
    p = n * hw
    cout = o_ref.shape[1]
    f32 = jnp.float32

    # --- unpack the small-parameter slab (one DMA instead of seven) ---
    pp = pp_ref[...]
    g1 = pp[:c, 0:1]
    b1 = pp[:c, 1:2]
    g2 = pp[:c, 2:3]
    b2 = pp[:c, 3:4]
    w3 = pp[:cout, 4:4 + c]           # (Cout, C)  1x1-conv weight
    b3 = pp[:cout, 4 + c:5 + c]       # (Cout, 1)  1x1-conv bias

    # ---- relu1, gathered into the lane-dense (C, N*H*W) layout ----
    a = jnp.concatenate([jnp.maximum(x_ref[i], 0.0) for i in range(n)], axis=-1)

    # ---- batchnorm1 (training mode: biased batch stats over N*H*W), one-pass ----
    mean1 = jnp.mean(a, axis=-1, keepdims=True)
    var1 = jnp.mean(a * a, axis=-1, keepdims=True) - mean1 * mean1
    s1 = jax.lax.rsqrt(var1 + _BN_EPS) * g1
    a = a * s1 + (b1 - mean1 * s1)

    # ---- dec1conv1: Conv2d(3x3, padding=1, bias=False) as ONE im2col matmul ----
    # Per-tap validity masks generated from iota (no HBM constant).
    pos = jax.lax.broadcasted_iota(jnp.int32, (1, p), 1)
    if (w & (w - 1)) == 0 and (h & (h - 1)) == 0:
        ww = jnp.bitwise_and(pos, w - 1)
        hh = jnp.bitwise_and(jnp.right_shift(pos, w.bit_length() - 1), h - 1)
    else:
        ww = pos % w
        hh = (pos // w) % h

    taps = []
    for ky in range(3):
        for kx in range(3):
            dy, dx = ky - 1, kx - 1
            off = dy * w + dx
            valid = ((hh + dy >= 0) & (hh + dy < h) &
                     (ww + dx >= 0) & (ww + dx < w)).astype(f32)
            # tap[pos] = a[pos + off] where the 3x3 window stays inside its
            # image, 0 elsewhere (== the conv's zero padding, applied after
            # BN1).  The mask also zeroes every position the roll wraps past
            # [0, P) or across an image boundary.
            shifted = a if off == 0 else pltpu.roll(a, (-off) % p, axis=1)
            taps.append(shifted * valid)
    col = jnp.concatenate(taps, axis=0)                         # (9C, P)
    y = jnp.dot(w2_ref[...], col, preferred_element_type=f32)   # (C, P)

    # ---- dec1relu1 ----
    y = jnp.maximum(y, 0.0)

    # ---- dec1norm1 (batch stats) folded into the 1x1 conv + sigmoid head ----
    mean2 = jnp.mean(y, axis=-1, keepdims=True)
    var2 = jnp.mean(y * y, axis=-1, keepdims=True) - mean2 * mean2
    s2 = jax.lax.rsqrt(var2 + _BN_EPS) * g2                     # (C, 1) scale
    t2 = b2 - mean2 * s2                                        # (C, 1) shift
    # Fold scale/shift into w3/b3 with tiny diag matmuls (O(C^2) work) instead
    # of an elementwise pass over the whole (C, P) slab; avoids any
    # (C,1)->(1,C) relayout.
    eye = (jax.lax.broadcasted_iota(jnp.int32, (c, c), 0) ==
           jax.lax.broadcasted_iota(jnp.int32, (c, c), 1)).astype(f32)
    w3s = jnp.dot(w3, eye * s2, preferred_element_type=f32)     # w3 . diag(s2)
    bias = jnp.sum(jnp.dot(w3, eye * t2, preferred_element_type=f32),
                   axis=-1, keepdims=True) + b3                 # w3 @ t2 + b3
    z = jax.nn.sigmoid(jnp.dot(w3s, y, preferred_element_type=f32) + bias)

    # ---- write back as (N, Cout, H*W): 256-lane aligned stores ----
    for i in range(n):
        o_ref[i] = z[:, i * hw:(i + 1) * hw]


# ----------------------------------------------------------------------------
# Parameters (torch-like raw shapes) and host-side packing (done once).
# ----------------------------------------------------------------------------
def init_params(key, init_features=4, out_channels=4):
    f = init_features
    ks = jax.random.split(key, 7)
    return dict(
        g1=1.0 + 0.1 * jax.random.normal(ks[0], (f,), jnp.float32),
        b1=0.1 * jax.random.normal(ks[1], (f,), jnp.float32),
        w_conv=0.1 * jax.random.normal(ks[2], (f, f, 3, 3), jnp.float32),
        g2=1.0 + 0.1 * jax.random.normal(ks[3], (f,), jnp.float32),
        b2=0.1 * jax.random.normal(ks[4], (f,), jnp.float32),
        w3=0.1 * jax.random.normal(ks[5], (out_channels, f), jnp.float32),
        b3=0.1 * jax.random.normal(ks[6], (out_channels,), jnp.float32),
    )


def pack_params(raw):
    """Pack all non-conv params into ONE small f32 slab (fewer input DMAs)."""
    f = int(raw["g1"].shape[0])
    cout = int(raw["w3"].shape[0])
    rows = max(f, cout)
    # (Cout, Cin, 3, 3) -> (Cout, 9*Cin), column order (ky, kx, cin) to match
    # the in-kernel im2col row order.  Kept f32 (no bf16).
    w2 = jnp.transpose(raw["w_conv"], (0, 2, 3, 1)).reshape(f, 9 * f)
    w2 = w2.astype(jnp.float32)
    slab = jnp.zeros((rows, 5 + f), jnp.float32)
    slab = slab.at[:f, 0].set(raw["g1"])
    slab = slab.at[:f, 1].set(raw["b1"])
    slab = slab.at[:f, 2].set(raw["g2"])
    slab = slab.at[:f, 3].set(raw["b2"])
    slab = slab.at[:cout, 4:4 + f].set(raw["w3"])
    slab = slab.at[:cout, 4 + f].set(raw["b3"])
    return {"w2": w2, "slab": slab}


# ----------------------------------------------------------------------------
# Forward: NCHW in / NCHW out; the only op besides the pallas_call is a free
# (contiguous) reshape on each side -- no transposes in the wrapper.
# ----------------------------------------------------------------------------
def segmenter_forward(packed, x_nchw, *, out_channels=4):
    n, c, h, w = x_nchw.shape
    hw = h * w
    x3 = x_nchw.reshape(n, c, hw).astype(jnp.float32)   # free reshape
    out = pl.pallas_call(
        functools.partial(_segmenter_kernel, h, w),
        out_shape=jax.ShapeDtypeStruct((n, out_channels, hw), jnp.float32),
        in_specs=[_VMEM, _VMEM, _VMEM],
        out_specs=_VMEM,
    )(x3, packed["w2"], packed["slab"])
    return out.reshape(n, out_channels, h, w)            # free reshape


# ----------------------------------------------------------------------------
# Pure-JAX reference of the PyTorch forward (training-mode BatchNorm).
# ----------------------------------------------------------------------------
def reference_forward(raw, x):
    def bn(y, g, b):
        mean = jnp.mean(y, axis=(0, 2, 3), keepdims=True)
        var = jnp.mean(jnp.square(y - mean), axis=(0, 2, 3), keepdims=True)
        return ((y - mean) * jax.lax.rsqrt(var + _BN_EPS)
                * g.reshape(1, -1, 1, 1) + b.reshape(1, -1, 1, 1))

    dn = ("NCHW", "OIHW", "NCHW")
    a = jnp.maximum(x, 0.0)
    a = bn(a, raw["g1"], raw["b1"])
    y = jax.lax.conv_general_dilated(
        a, raw["w_conv"], (1, 1), "SAME", dimension_numbers=dn,
        precision=jax.lax.Precision.HIGHEST)
    y = jnp.maximum(y, 0.0)
    y = bn(y, raw["g2"], raw["b2"])
    z = jax.lax.conv_general_dilated(
        y, raw["w3"][:, :, None, None], (1, 1), "SAME", dimension_numbers=dn,
        precision=jax.lax.Precision.HIGHEST)
    z = z + raw["b3"].reshape(1, -1, 1, 1)
    return jax.nn.sigmoid(z)


if __name__ == "__main__":
    key = jax.random.PRNGKey(0)
    k_param, k_x = jax.random.split(key)

    raw = init_params(k_param, init_features=4, out_channels=4)
    packed = pack_params(raw)

    # PyTorch-style NCHW input: batch=2, channels=init_features=4, spatial 16x16
    x = jax.random.normal(k_x, (2, 4, 16, 16), jnp.float32)

    fwd = jax.jit(segmenter_forward, static_argnames=("out_channels",))
    out = fwd(packed, x, out_channels=4)
    jax.block_until_ready(out)

    assert out.shape == (2, 4, 16, 16)
    assert bool(jnp.all(jnp.isfinite(out)))
    assert bool(jnp.all((out >= 0.0) & (out <= 1.0)))     # sigmoid range

    # Equivalence check vs. the pure-JAX reference (guards the roll+mask
    # im2col rewrite and the BN2 fold).
    ref = reference_forward(raw, x)
    assert bool(jnp.allclose(out, ref, atol=2e-3, rtol=0.0)), \
        float(jnp.max(jnp.abs(out - ref)))

    print("KERNEL_OK")
</pallas_src>

<mosaic_0001>
module attributes {stable_mosaic.version = 11 : i64} {
  func.func @_segmenter_kernel(%arg0: memref<2x4x256xf32, #tpu.memory_space<vmem>>, %arg1: memref<4x36xf32, #tpu.memory_space<vmem>>, %arg2: memref<4x9xf32, #tpu.memory_space<vmem>>, %arg3: memref<2x4x256xf32, #tpu.memory_space<vmem>>) attributes {dimension_semantics = [], scalar_prefetch = 0 : i64, scratch_operands = 0 : i64, tpu.core_type = #tpu.core_type<tc>} {
    %c0 = arith.constant 0 : index
    %c0_0 = arith.constant 0 : index
    %0 = vector.load %arg2[%c0, %c0_0] : memref<4x9xf32, #tpu.memory_space<vmem>>, vector<4x9xf32>
    %1 = vector.extract_strided_slice %0 {offsets = [0, 0], sizes = [4, 1], strides = [1, 1]} : vector<4x9xf32> to vector<4x1xf32>
    %2 = vector.extract_strided_slice %0 {offsets = [0, 1], sizes = [4, 1], strides = [1, 1]} : vector<4x9xf32> to vector<4x1xf32>
    %3 = vector.extract_strided_slice %0 {offsets = [0, 2], sizes = [4, 1], strides = [1, 1]} : vector<4x9xf32> to vector<4x1xf32>
    %4 = vector.extract_strided_slice %0 {offsets = [0, 3], sizes = [4, 1], strides = [1, 1]} : vector<4x9xf32> to vector<4x1xf32>
    %5 = vector.extract_strided_slice %0 {offsets = [0, 4], sizes = [4, 4], strides = [1, 1]} : vector<4x9xf32> to vector<4x4xf32>
    %6 = vector.extract_strided_slice %0 {offsets = [0, 8], sizes = [4, 1], strides = [1, 1]} : vector<4x9xf32> to vector<4x1xf32>
    %c0_1 = arith.constant 0 : index
    %c0_2 = arith.constant 0 : index
    %c0_3 = arith.constant 0 : index
    %7 = vector.load %arg0[%c0_1, %c0_2, %c0_3] : memref<2x4x256xf32, #tpu.memory_space<vmem>>, vector<1x4x256xf32>
    %8 = vector.shape_cast %7 : vector<1x4x256xf32> to vector<4x256xf32>
    %cst = arith.constant 0.000000e+00 : f32
    %9 = vector.broadcast %cst : f32 to vector<4x256xf32>
    %10 = arith.maximumf %8, %9 : vector<4x256xf32>
    %c1 = arith.constant 1 : index
    %c0_4 = arith.constant 0 : index
    %c0_5 = arith.constant 0 : index
    %11 = vector.load %arg0[%c1, %c0_4, %c0_5] : memref<2x4x256xf32, #tpu.memory_space<vmem>>, vector<1x4x256xf32>
    %12 = vector.shape_cast %11 : vector<1x4x256xf32> to vector<4x256xf32>
    %cst_6 = arith.constant 0.000000e+00 : f32
    %13 = vector.broadcast %cst_6 : f32 to vector<4x256xf32>
    %14 = arith.maximumf %12, %13 : vector<4x256xf32>
    %15 = tpu.concatenate %10, %14 in 1 : vector<4x256xf32>, vector<4x256xf32> -> vector<4x512xf32>
    %cst_7 = arith.constant dense<0.000000e+00> : vector<4xf32>
    %16 = vector.multi_reduction <add>, %15, %cst_7 [1] : vector<4x512xf32> to vector<4xf32>
    %17 = vector.shape_cast %16 : vector<4xf32> to vector<4x1xf32>
    %cst_8 = arith.constant 5.120000e+02 : f32
    %18 = vector.broadcast %cst_8 : f32 to vector<4x1xf32>
    %19 = arith.divf %17, %18 : vector<4x1xf32>
    %20 = arith.mulf %15, %15 : vector<4x512xf32>
    %cst_9 = arith.constant dense<0.000000e+00> : vector<4xf32>
    %21 = vector.multi_reduction <add>, %20, %cst_9 [1] : vector<4x512xf32> to vector<4xf32>
    %22 = vector.shape_cast %21 : vector<4xf32> to vector<4x1xf32>
    %cst_10 = arith.constant 5.120000e+02 : f32
    %23 = vector.broadcast %cst_10 : f32 to vector<4x1xf32>
    %24 = arith.divf %22, %23 : vector<4x1xf32>
    %25 = arith.mulf %19, %19 : vector<4x1xf32>
    %26 = arith.subf %24, %25 : vector<4x1xf32>
    %cst_11 = arith.constant 9.99999974E-6 : f32
    %27 = vector.broadcast %cst_11 : f32 to vector<4x1xf32>
    %28 = arith.addf %26, %27 : vector<4x1xf32>
    %29 = math.rsqrt %28 : vector<4x1xf32>
    %30 = arith.mulf %29, %1 : vector<4x1xf32>
    %31 = vector.broadcast %30 : vector<4x1xf32> to vector<4x512xf32>
    %32 = arith.mulf %15, %31 : vector<4x512xf32>
    %33 = arith.mulf %19, %30 : vector<4x1xf32>
    %34 = arith.subf %2, %33 : vector<4x1xf32>
    %35 = vector.broadcast %34 : vector<4x1xf32> to vector<4x512xf32>
    %36 = arith.addf %32, %35 : vector<4x512xf32>
    %37 = tpu.iota {dimensions = array<i32: 1>} : vector<1x512xi32>
    %c15_i32 = arith.constant 15 : i32
    %38 = vector.broadcast %c15_i32 : i32 to vector<1x512xi32>
    %39 = arith.andi %37, %38 : vector<1x512xi32>
    %c4_i32 = arith.constant 4 : i32
    %40 = vector.broadcast %c4_i32 : i32 to vector<1x512xi32>
    %41 = arith.shrsi %37, %40 : vector<1x512xi32>
    %c15_i32_12 = arith.constant 15 : i32
    %42 = vector.broadcast %c15_i32_12 : i32 to vector<1x512xi32>
    %43 = arith.andi %41, %42 : vector<1x512xi32>
    %c-1_i32 = arith.constant -1 : i32
    %44 = vector.broadcast %c-1_i32 : i32 to vector<1x512xi32>
    %45 = arith.addi %43, %44 : vector<1x512xi32>
    %c0_i32 = arith.constant 0 : i32
    %46 = vector.broadcast %c0_i32 : i32 to vector<1x512xi32>
    %47 = arith.cmpi sge, %45, %46 : vector<1x512xi32>
    %c-1_i32_13 = arith.constant -1 : i32
    %48 = vector.broadcast %c-1_i32_13 : i32 to vector<1x512xi32>
    %49 = arith.addi %43, %48 : vector<1x512xi32>
    %c16_i32 = arith.constant 16 : i32
    %50 = vector.broadcast %c16_i32 : i32 to vector<1x512xi32>
    %51 = arith.cmpi slt, %49, %50 : vector<1x512xi32>
    %52 = arith.andi %47, %51 : vector<1x512xi1>
    %c-1_i32_14 = arith.constant -1 : i32
    %53 = vector.broadcast %c-1_i32_14 : i32 to vector<1x512xi32>
    %54 = arith.addi %39, %53 : vector<1x512xi32>
    %c0_i32_15 = arith.constant 0 : i32
    %55 = vector.broadcast %c0_i32_15 : i32 to vector<1x512xi32>
    %56 = arith.cmpi sge, %54, %55 : vector<1x512xi32>
    %57 = arith.andi %52, %56 : vector<1x512xi1>
    %c-1_i32_16 = arith.constant -1 : i32
    %58 = vector.broadcast %c-1_i32_16 : i32 to vector<1x512xi32>
    %59 = arith.addi %39, %58 : vector<1x512xi32>
    %c16_i32_17 = arith.constant 16 : i32
    %60 = vector.broadcast %c16_i32_17 : i32 to vector<1x512xi32>
    %61 = arith.cmpi slt, %59, %60 : vector<1x512xi32>
    %62 = arith.andi %57, %61 : vector<1x512xi1>
    %63 = arith.extui %62 : vector<1x512xi1> to vector<1x512xi32>
    %64 = arith.sitofp %63 : vector<1x512xi32> to vector<1x512xf32>
    %c17_i32 = arith.constant 17 : i32
    %65 = tpu.dynamic_rotate %36 by %c17_i32 dim 1 : vector<4x512xf32>, i32 -> vector<4x512xf32>
    %66 = vector.broadcast %64 : vector<1x512xf32> to vector<4x512xf32>
    %67 = arith.mulf %65, %66 : vector<4x512xf32>
    %c-1_i32_18 = arith.constant -1 : i32
    %68 = vector.broadcast %c-1_i32_18 : i32 to vector<1x512xi32>
    %69 = arith.addi %43, %68 : vector<1x512xi32>
    %c0_i32_19 = arith.constant 0 : i32
    %70 = vector.broadcast %c0_i32_19 : i32 to vector<1x512xi32>
    %71 = arith.cmpi sge, %69, %70 : vector<1x512xi32>
    %c-1_i32_20 = arith.constant -1 : i32
    %72 = vector.broadcast %c-1_i32_20 : i32 to vector<1x512xi32>
    %73 = arith.addi %43, %72 : vector<1x512xi32>
    %c16_i32_21 = arith.constant 16 : i32
    %74 = vector.broadcast %c16_i32_21 : i32 to vector<1x512xi32>
    %75 = arith.cmpi slt, %73, %74 : vector<1x512xi32>
    %76 = arith.andi %71, %75 : vector<1x512xi1>
    %c0_i32_22 = arith.constant 0 : i32
    %77 = vector.broadcast %c0_i32_22 : i32 to vector<1x512xi32>
    %78 = arith.addi %39, %77 : vector<1x512xi32>
    %c0_i32_23 = arith.constant 0 : i32
    %79 = vector.broadcast %c0_i32_23 : i32 to vector<1x512xi32>
    %80 = arith.cmpi sge, %78, %79 : vector<1x512xi32>
    %81 = arith.andi %76, %80 : vector<1x512xi1>
    %c0_i32_24 = arith.constant 0 : i32
    %82 = vector.broadcast %c0_i32_24 : i32 to vector<1x512xi32>
    %83 = arith.addi %39, %82 : vector<1x512xi32>
    %c16_i32_25 = arith.constant 16 : i32
    %84 = vector.broadcast %c16_i32_25 : i32 to vector<1x512xi32>
    %85 = arith.cmpi slt, %83, %84 : vector<1x512xi32>
    %86 = arith.andi %81, %85 : vector<1x512xi1>
    %87 = arith.extui %86 : vector<1x512xi1> to vector<1x512xi32>
    %88 = arith.sitofp %87 : vector<1x512xi32> to vector<1x512xf32>
    %c16_i32_26 = arith.constant 16 : i32
    %89 = tpu.dynamic_rotate %36 by %c16_i32_26 dim 1 : vector<4x512xf32>, i32 -> vector<4x512xf32>
    %90 = vector.broadcast %88 : vector<1x512xf32> to vector<4x512xf32>
    %91 = arith.mulf %89, %90 : vector<4x512xf32>
    %c-1_i32_27 = arith.constant -1 : i32
    %92 = vector.broadcast %c-1_i32_27 : i32 to vector<1x512xi32>
    %93 = arith.addi %43, %92 : vector<1x512xi32>
    %c0_i32_28 = arith.constant 0 : i32
    %94 = vector.broadcast %c0_i32_28 : i32 to vector<1x512xi32>
    %95 = arith.cmpi sge, %93, %94 : vector<1x512xi32>
    %c-1_i32_29 = arith.constant -1 : i32
    %96 = vector.broadcast %c-1_i32_29 : i32 to vector<1x512xi32>
    %97 = arith.addi %43, %96 : vector<1x512xi32>
    %c16_i32_30 = arith.constant 16 : i32
    %98 = vector.broadcast %c16_i32_30 : i32 to vector<1x512xi32>
    %99 = arith.cmpi slt, %97, %98 : vector<1x512xi32>
    %100 = arith.andi %95, %99 : vector<1x512xi1>
    %c1_i32 = arith.constant 1 : i32
    %101 = vector.broadcast %c1_i32 : i32 to vector<1x512xi32>
    %102 = arith.addi %39, %101 : vector<1x512xi32>
    %c0_i32_31 = arith.constant 0 : i32
    %103 = vector.broadcast %c0_i32_31 : i32 to vector<1x512xi32>
    %104 = arith.cmpi sge, %102, %103 : vector<1x512xi32>
    %105 = arith.andi %100, %104 : vector<1x512xi1>
    %c1_i32_32 = arith.constant 1 : i32
    %106 = vector.broadcast %c1_i32_32 : i32 to vector<1x512xi32>
    %107 = arith.addi %39, %106 : vector<1x512xi32>
    %c16_i32_33 = arith.constant 16 : i32
    %108 = vector.broadcast %c16_i32_33 : i32 to vector<1x512xi32>
    %109 = arith.cmpi slt, %107, %108 : vector<1x512xi32>
    %110 = arith.andi %105, %109 : vector<1x512xi1>
    %111 = arith.extui %110 : vector<1x512xi1> to vector<1x512xi32>
    %112 = arith.sitofp %111 : vector<1x512xi32> to vector<1x512xf32>
    %c15_i32_34 = arith.constant 15 : i32
    %113 = tpu.dynamic_rotate %36 by %c15_i32_34 dim 1 : vector<4x512xf32>, i32 -> vector<4x512xf32>
    %114 = vector.broadcast %112 : vector<1x512xf32> to vector<4x512xf32>
    %115 = arith.mulf %113, %114 : vector<4x512xf32>
    %c0_i32_35 = arith.constant 0 : i32
    %116 = vector.broadcast %c0_i32_35 : i32 to vector<1x512xi32>
    %117 = arith.addi %43, %116 : vector<1x512xi32>
    %c0_i32_36 = arith.constant 0 : i32
    %118 = vector.broadcast %c0_i32_36 : i32 to vector<1x512xi32>
    %119 = arith.cmpi sge, %117, %118 : vector<1x512xi32>
    %c0_i32_37 = arith.constant 0 : i32
    %120 = vector.broadcast %c0_i32_37 : i32 to vector<1x512xi32>
    %121 = arith.addi %43, %120 : vector<1x512xi32>
    %c16_i32_38 = arith.constant 16 : i32
    %122 = vector.broadcast %c16_i32_38 : i32 to vector<1x512xi32>
    %123 = arith.cmpi slt, %121, %122 : vector<1x512xi32>
    %124 = arith.andi %119, %123 : vector<1x512xi1>
    %c-1_i32_39 = arith.constant -1 : i32
    %125 = vector.broadcast %c-1_i32_39 : i32 to vector<1x512xi32>
    %126 = arith.addi %39, %125 : vector<1x512xi32>
    %c0_i32_40 = arith.constant 0 : i32
    %127 = vector.broadcast %c0_i32_40 : i32 to vector<1x512xi32>
    %128 = arith.cmpi sge, %126, %127 : vector<1x512xi32>
    %129 = arith.andi %124, %128 : vector<1x512xi1>
    %c-1_i32_41 = arith.constant -1 : i32
    %130 = vector.broadcast %c-1_i32_41 : i32 to vector<1x512xi32>
    %131 = arith.addi %39, %130 : vector<1x512xi32>
    %c16_i32_42 = arith.constant 16 : i32
    %132 = vector.broadcast %c16_i32_42 : i32 to vector<1x512xi32>
    %133 = arith.cmpi slt, %131, %132 : vector<1x512xi32>
    %134 = arith.andi %129, %133 : vector<1x512xi1>
    %135 = arith.extui %134 : vector<1x512xi1> to vector<1x512xi32>
    %136 = arith.sitofp %135 : vector<1x512xi32> to vector<1x512xf32>
    %c1_i32_43 = arith.constant 1 : i32
    %137 = tpu.dynamic_rotate %36 by %c1_i32_43 dim 1 : vector<4x512xf32>, i32 -> vector<4x512xf32>
    %138 = vector.broadcast %136 : vector<1x512xf32> to vector<4x512xf32>
    %139 = arith.mulf %137, %138 : vector<4x512xf32>
    %c0_i32_44 = arith.constant 0 : i32
    %140 = vector.broadcast %c0_i32_44 : i32 to vector<1x512xi32>
    %141 = arith.addi %43, %140 : vector<1x512xi32>
    %c0_i32_45 = arith.constant 0 : i32
    %142 = vector.broadcast %c0_i32_45 : i32 to vector<1x512xi32>
    %143 = arith.cmpi sge, %141, %142 : vector<1x512xi32>
    %c0_i32_46 = arith.constant 0 : i32
    %144 = vector.broadcast %c0_i32_46 : i32 to vector<1x512xi32>
    %145 = arith.addi %43, %144 : vector<1x512xi32>
    %c16_i32_47 = arith.constant 16 : i32
    %146 = vector.broadcast %c16_i32_47 : i32 to vector<1x512xi32>
    %147 = arith.cmpi slt, %145, %146 : vector<1x512xi32>
    %148 = arith.andi %143, %147 : vector<1x512xi1>
    %c0_i32_48 = arith.constant 0 : i32
    %149 = vector.broadcast %c0_i32_48 : i32 to vector<1x512xi32>
    %150 = arith.addi %39, %149 : vector<1x512xi32>
    %c0_i32_49 = arith.constant 0 : i32
    %151 = vector.broadcast %c0_i32_49 : i32 to vector<1x512xi32>
    %152 = arith.cmpi sge, %150, %151 : vector<1x512xi32>
    %153 = arith.andi %148, %152 : vector<1x512xi1>
    %c0_i32_50 = arith.constant 0 : i32
    %154 = vector.broadcast %c0_i32_50 : i32 to vector<1x512xi32>
    %155 = arith.addi %39, %154 : vector<1x512xi32>
    %c16_i32_51 = arith.constant 16 : i32
    %156 = vector.broadcast %c16_i32_51 : i32 to vector<1x512xi32>
    %157 = arith.cmpi slt, %155, %156 : vector<1x512xi32>
    %158 = arith.andi %153, %157 : vector<1x512xi1>
    %159 = arith.extui %158 : vector<1x512xi1> to vector<1x512xi32>
    %160 = arith.sitofp %159 : vector<1x512xi32> to vector<1x512xf32>
    %161 = vector.broadcast %160 : vector<1x512xf32> to vector<4x512xf32>
    %162 = arith.mulf %36, %161 : vector<4x512xf32>
    %c0_i32_52 = arith.constant 0 : i32
    %163 = vector.broadcast %c0_i32_52 : i32 to vector<1x512xi32>
    %164 = arith.addi %43, %163 : vector<1x512xi32>
    %c0_i32_53 = arith.constant 0 : i32
    %165 = vector.broadcast %c0_i32_53 : i32 to vector<1x512xi32>
    %166 = arith.cmpi sge, %164, %165 : vector<1x512xi32>
    %c0_i32_54 = arith.constant 0 : i32
    %167 = vector.broadcast %c0_i32_54 : i32 to vector<1x512xi32>
    %168 = arith.addi %43, %167 : vector<1x512xi32>
    %c16_i32_55 = arith.constant 16 : i32
    %169 = vector.broadcast %c16_i32_55 : i32 to vector<1x512xi32>
    %170 = arith.cmpi slt, %168, %169 : vector<1x512xi32>
    %171 = arith.andi %166, %170 : vector<1x512xi1>
    %c1_i32_56 = arith.constant 1 : i32
    %172 = vector.broadcast %c1_i32_56 : i32 to vector<1x512xi32>
    %173 = arith.addi %39, %172 : vector<1x512xi32>
    %c0_i32_57 = arith.constant 0 : i32
    %174 = vector.broadcast %c0_i32_57 : i32 to vector<1x512xi32>
    %175 = arith.cmpi sge, %173, %174 : vector<1x512xi32>
    %176 = arith.andi %171, %175 : vector<1x512xi1>
    %c1_i32_58 = arith.constant 1 : i32
    %177 = vector.broadcast %c1_i32_58 : i32 to vector<1x512xi32>
    %178 = arith.addi %39, %177 : vector<1x512xi32>
    %c16_i32_59 = arith.constant 16 : i32
    %179 = vector.broadcast %c16_i32_59 : i32 to vector<1x512xi32>
    %180 = arith.cmpi slt, %178, %179 : vector<1x512xi32>
    %181 = arith.andi %176, %180 : vector<1x512xi1>
    %182 = arith.extui %181 : vector<1x512xi1> to vector<1x512xi32>
    %183 = arith.sitofp %182 : vector<1x512xi32> to vector<1x512xf32>
    %c511_i32 = arith.constant 511 : i32
    %184 = tpu.dynamic_rotate %36 by %c511_i32 dim 1 : vector<4x512xf32>, i32 -> vector<4x512xf32>
    %185 = vector.broadcast %183 : vector<1x512xf32> to vector<4x512xf32>
    %186 = arith.mulf %184, %185 : vector<4x512xf32>
    %c1_i32_60 = arith.constant 1 : i32
    %187 = vector.broadcast %c1_i32_60 : i32 to vector<1x512xi32>
    %188 = arith.addi %43, %187 : vector<1x512xi32>
    %c0_i32_61 = arith.constant 0 : i32
    %189 = vector.broadcast %c0_i32_61 : i32 to vector<1x512xi32>
    %190 = arith.cmpi sge, %188, %189 : vector<1x512xi32>
    %c1_i32_62 = arith.constant 1 : i32
    %191 = vector.broadcast %c1_i32_62 : i32 to vector<1x512xi32>
    %192 = arith.addi %43, %191 : vector<1x512xi32>
    %c16_i32_63 = arith.constant 16 : i32
    %193 = vector.broadcast %c16_i32_63 : i32 to vector<1x512xi32>
    %194 = arith.cmpi slt, %192, %193 : vector<1x512xi32>
    %195 = arith.andi %190, %194 : vector<1x512xi1>
    %c-1_i32_64 = arith.constant -1 : i32
    %196 = vector.broadcast %c-1_i32_64 : i32 to vector<1x512xi32>
    %197 = arith.addi %39, %196 : vector<1x512xi32>
    %c0_i32_65 = arith.constant 0 : i32
    %198 = vector.broadcast %c0_i32_65 : i32 to vector<1x512xi32>
    %199 = arith.cmpi sge, %197, %198 : vector<1x512xi32>
    %200 = arith.andi %195, %199 : vector<1x512xi1>
    %c-1_i32_66 = arith.constant -1 : i32
    %201 = vector.broadcast %c-1_i32_66 : i32 to vector<1x512xi32>
    %202 = arith.addi %39, %201 : vector<1x512xi32>
    %c16_i32_67 = arith.constant 16 : i32
    %203 = vector.broadcast %c16_i32_67 : i32 to vector<1x512xi32>
    %204 = arith.cmpi slt, %202, %203 : vector<1x512xi32>
    %205 = arith.andi %200, %204 : vector<1x512xi1>
    %206 = arith.extui %205 : vector<1x512xi1> to vector<1x512xi32>
    %207 = arith.sitofp %206 : vector<1x512xi32> to vector<1x512xf32>
    %c497_i32 = arith.constant 497 : i32
    %208 = tpu.dynamic_rotate %36 by %c497_i32 dim 1 : vector<4x512xf32>, i32 -> vector<4x512xf32>
    %209 = vector.broadcast %207 : vector<1x512xf32> to vector<4x512xf32>
    %210 = arith.mulf %208, %209 : vector<4x512xf32>
    %c1_i32_68 = arith.constant 1 : i32
    %211 = vector.broadcast %c1_i32_68 : i32 to vector<1x512xi32>
    %212 = arith.addi %43, %211 : vector<1x512xi32>
    %c0_i32_69 = arith.constant 0 : i32
    %213 = vector.broadcast %c0_i32_69 : i32 to vector<1x512xi32>
    %214 = arith.cmpi sge, %212, %213 : vector<1x512xi32>
    %c1_i32_70 = arith.constant 1 : i32
    %215 = vector.broadcast %c1_i32_70 : i32 to vector<1x512xi32>
    %216 = arith.addi %43, %215 : vector<1x512xi32>
    %c16_i32_71 = arith.constant 16 : i32
    %217 = vector.broadcast %c16_i32_71 : i32 to vector<1x512xi32>
    %218 = arith.cmpi slt, %216, %217 : vector<1x512xi32>
    %219 = arith.andi %214, %218 : vector<1x512xi1>
    %c0_i32_72 = arith.constant 0 : i32
    %220 = vector.broadcast %c0_i32_72 : i32 to vector<1x512xi32>
    %221 = arith.addi %39, %220 : vector<1x512xi32>
    %c0_i32_73 = arith.constant 0 : i32
    %222 = vector.broadcast %c0_i32_73 : i32 to vector<1x512xi32>
    %223 = arith.cmpi sge, %221, %222 : vector<1x512xi32>
    %224 = arith.andi %219, %223 : vector<1x512xi1>
    %c0_i32_74 = arith.constant 0 : i32
    %225 = vector.broadcast %c0_i32_74 : i32 to vector<1x512xi32>
    %226 = arith.addi %39, %225 : vector<1x512xi32>
    %c16_i32_75 = arith.constant 16 : i32
    %227 = vector.broadcast %c16_i32_75 : i32 to vector<1x512xi32>
    %228 = arith.cmpi slt, %226, %227 : vector<1x512xi32>
    %229 = arith.andi %224, %228 : vector<1x512xi1>
    %230 = arith.extui %229 : vector<1x512xi1> to vector<1x512xi32>
    %231 = arith.sitofp %230 : vector<1x512xi32> to vector<1x512xf32>
    %c496_i32 = arith.constant 496 : i32
    %232 = tpu.dynamic_rotate %36 by %c496_i32 dim 1 : vector<4x512xf32>, i32 -> vector<4x512xf32>
    %233 = vector.broadcast %231 : vector<1x512xf32> to vector<4x512xf32>
    %234 = arith.mulf %232, %233 : vector<4x512xf32>
    %c1_i32_76 = arith.constant 1 : i32
    %235 = vector.broadcast %c1_i32_76 : i32 to vector<1x512xi32>
    %236 = arith.addi %43, %235 : vector<1x512xi32>
    %c0_i32_77 = arith.constant 0 : i32
    %237 = vector.broadcast %c0_i32_77 : i32 to vector<1x512xi32>
    %238 = arith.cmpi sge, %236, %237 : vector<1x512xi32>
    %c1_i32_78 = arith.constant 1 : i32
    %239 = vector.broadcast %c1_i32_78 : i32 to vector<1x512xi32>
    %240 = arith.addi %43, %239 : vector<1x512xi32>
    %c16_i32_79 = arith.constant 16 : i32
    %241 = vector.broadcast %c16_i32_79 : i32 to vector<1x512xi32>
    %242 = arith.cmpi slt, %240, %241 : vector<1x512xi32>
    %243 = arith.andi %238, %242 : vector<1x512xi1>
    %c1_i32_80 = arith.constant 1 : i32
    %244 = vector.broadcast %c1_i32_80 : i32 to vector<1x512xi32>
    %245 = arith.addi %39, %244 : vector<1x512xi32>
    %c0_i32_81 = arith.constant 0 : i32
    %246 = vector.broadcast %c0_i32_81 : i32 to vector<1x512xi32>
    %247 = arith.cmpi sge, %245, %246 : vector<1x512xi32>
    %248 = arith.andi %243, %247 : vector<1x512xi1>
    %c1_i32_82 = arith.constant 1 : i32
    %249 = vector.broadcast %c1_i32_82 : i32 to vector<1x512xi32>
    %250 = arith.addi %39, %249 : vector<1x512xi32>
    %c16_i32_83 = arith.constant 16 : i32
    %251 = vector.broadcast %c16_i32_83 : i32 to vector<1x512xi32>
    %252 = arith.cmpi slt, %250, %251 : vector<1x512xi32>
    %253 = arith.andi %248, %252 : vector<1x512xi1>
    %254 = arith.extui %253 : vector<1x512xi1> to vector<1x512xi32>
    %255 = arith.sitofp %254 : vector<1x512xi32> to vector<1x512xf32>
    %c495_i32 = arith.constant 495 : i32
    %256 = tpu.dynamic_rotate %36 by %c495_i32 dim 1 : vector<4x512xf32>, i32 -> vector<4x512xf32>
    %257 = vector.broadcast %255 : vector<1x512xf32> to vector<4x512xf32>
    %258 = arith.mulf %256, %257 : vector<4x512xf32>
    %259 = tpu.concatenate %67, %91, %115, %139, %162, %186, %210, %234, %258 in 0 : vector<4x512xf32>, vector<4x512xf32>, vector<4x512xf32>, vector<4x512xf32>, vector<4x512xf32>, vector<4x512xf32>, vector<4x512xf32>, vector<4x512xf32>, vector<4x512xf32> -> vector<36x512xf32>
    %c0_84 = arith.constant 0 : index
    %c0_85 = arith.constant 0 : index
    %260 = vector.load %arg1[%c0_84, %c0_85] : memref<4x36xf32, #tpu.memory_space<vmem>>, vector<4x36xf32>
    %cst_86 = arith.constant dense<0.000000e+00> : vector<4x512xf32>
    %261 = tpu.matmul %260, %259, %cst_86 {dimension_numbers = #tpu.dot_dimension_numbers<[1], [0], [0], [1], [0, 0, 1, 1], [], []>} : vector<4x36xf32>, vector<36x512xf32>, vector<4x512xf32> -> vector<4x512xf32>
    %cst_87 = arith.constant 0.000000e+00 : f32
    %262 = vector.broadcast %cst_87 : f32 to vector<4x512xf32>
    %263 = arith.maximumf %261, %262 : vector<4x512xf32>
    %cst_88 = arith.constant dense<0.000000e+00> : vector<4xf32>
    %264 = vector.multi_reduction <add>, %263, %cst_88 [1] : vector<4x512xf32> to vector<4xf32>
    %265 = vector.shape_cast %264 : vector<4xf32> to vector<4x1xf32>
    %cst_89 = arith.constant 5.120000e+02 : f32
    %266 = vector.broadcast %cst_89 : f32 to vector<4x1xf32>
    %267 = arith.divf %265, %266 : vector<4x1xf32>
    %268 = arith.mulf %263, %263 : vector<4x512xf32>
    %cst_90 = arith.constant dense<0.000000e+00> : vector<4xf32>
    %269 = vector.multi_reduction <add>, %268, %cst_90 [1] : vector<4x512xf32> to vector<4xf32>
    %270 = vector.shape_cast %269 : vector<4xf32> to vector<4x1xf32>
    %cst_91 = arith.constant 5.120000e+02 : f32
    %271 = vector.broadcast %cst_91 : f32 to vector<4x1xf32>
    %272 = arith.divf %270, %271 : vector<4x1xf32>
    %273 = arith.mulf %267, %267 : vector<4x1xf32>
    %274 = arith.subf %272, %273 : vector<4x1xf32>
    %cst_92 = arith.constant 9.99999974E-6 : f32
    %275 = vector.broadcast %cst_92 : f32 to vector<4x1xf32>
    %276 = arith.addf %274, %275 : vector<4x1xf32>
    %277 = math.rsqrt %276 : vector<4x1xf32>
    %278 = arith.mulf %277, %3 : vector<4x1xf32>
    %279 = arith.mulf %267, %278 : vector<4x1xf32>
    %280 = arith.subf %4, %279 : vector<4x1xf32>
    %281 = tpu.iota {dimensions = array<i32: 0>} : vector<4x4xi32>
    %282 = tpu.iota {dimensions = array<i32: 1>} : vector<4x4xi32>
    %283 = arith.cmpi eq, %281, %282 : vector<4x4xi32>
    %284 = arith.extui %283 : vector<4x4xi1> to vector<4x4xi32>
    %285 = arith.sitofp %284 : vector<4x4xi32> to vector<4x4xf32>
    %286 = vector.broadcast %278 : vector<4x1xf32> to vector<4x4xf32>
    %287 = arith.mulf %285, %286 : vector<4x4xf32>
    %cst_93 = arith.constant dense<0.000000e+00> : vector<4x4xf32>
    %288 = tpu.matmul %5, %287, %cst_93 {dimension_numbers = #tpu.dot_dimension_numbers<[1], [0], [0], [1], [0, 0, 1, 1], [], []>} : vector<4x4xf32>, vector<4x4xf32>, vector<4x4xf32> -> vector<4x4xf32>
    %289 = vector.broadcast %280 : vector<4x1xf32> to vector<4x4xf32>
    %290 = arith.mulf %285, %289 : vector<4x4xf32>
    %cst_94 = arith.constant dense<0.000000e+00> : vector<4x4xf32>
    %291 = tpu.matmul %5, %290, %cst_94 {dimension_numbers = #tpu.dot_dimension_numbers<[1], [0], [0], [1], [0, 0, 1, 1], [], []>} : vector<4x4xf32>, vector<4x4xf32>, vector<4x4xf32> -> vector<4x4xf32>
    %cst_95 = arith.constant dense<0.000000e+00> : vector<4xf32>
    %292 = vector.multi_reduction <add>, %291, %cst_95 [1] : vector<4x4xf32> to vector<4xf32>
    %293 = vector.shape_cast %292 : vector<4xf32> to vector<4x1xf32>
    %294 = arith.addf %293, %6 : vector<4x1xf32>
    %cst_96 = arith.constant dense<0.000000e+00> : vector<4x512xf32>
    %295 = tpu.matmul %288, %263, %cst_96 {dimension_numbers = #tpu.dot_dimension_numbers<[1], [0], [0], [1], [0, 0, 1, 1], [], []>} : vector<4x4xf32>, vector<4x512xf32>, vector<4x512xf32> -> vector<4x512xf32>
    %296 = vector.broadcast %294 : vector<4x1xf32> to vector<4x512xf32>
    %297 = arith.addf %295, %296 : vector<4x512xf32>
    %298 = arith.negf %297 : vector<4x512xf32>
    %299 = math.exp %298 : vector<4x512xf32>
    %cst_97 = arith.constant 1.000000e+00 : f32
    %300 = vector.broadcast %cst_97 : f32 to vector<4x512xf32>
    %301 = arith.addf %300, %299 : vector<4x512xf32>
    %302 = arith.divf %300, %301 : vector<4x512xf32>
    %303 = vector.extract_strided_slice %302 {offsets = [0, 0], sizes = [4, 256], strides = [1, 1]} : vector<4x512xf32> to vector<4x256xf32>
    %c0_98 = arith.constant 0 : index
    %c0_99 = arith.constant 0 : index
    %c0_100 = arith.constant 0 : index
    %304 = vector.load %arg3[%c0_98, %c0_99, %c0_100] : memref<2x4x256xf32, #tpu.memory_space<vmem>>, vector<1x4x256xf32>
    %305 = vector.shape_cast %304 : vector<1x4x256xf32> to vector<4x256xf32>
    %306 = vector.shape_cast %303 : vector<4x256xf32> to vector<1x4x256xf32>
    tpu.vector_store %arg3[%c0_98, %c0_99, %c0_100], %306 {strides = array<i32>} : memref<2x4x256xf32, #tpu.memory_space<vmem>>, vector<1x4x256xf32>,
    %307 = vector.extract_strided_slice %302 {offsets = [0, 256], sizes = [4, 256], strides = [1, 1]} : vector<4x512xf32> to vector<4x256xf32>
    %c1_101 = arith.constant 1 : index
    %c0_102 = arith.constant 0 : index
    %c0_103 = arith.constant 0 : index
    %308 = vector.load %arg3[%c1_101, %c0_102, %c0_103] : memref<2x4x256xf32, #tpu.memory_space<vmem>>, vector<1x4x256xf32>
    %309 = vector.shape_cast %308 : vector<1x4x256xf32> to vector<4x256xf32>
    %310 = vector.shape_cast %307 : vector<4x256xf32> to vector<1x4x256xf32>
    tpu.vector_store %arg3[%c1_101, %c0_102, %c0_103], %310 {strides = array<i32>} : memref<2x4x256xf32, #tpu.memory_space<vmem>>, vector<1x4x256xf32>,
    return
  }
}

</mosaic_0001>

<llo_original>
// kernel: segmenter_forward.1
$region0: #{segmenter_forward.1}
  #allocation0 [shape = 'u32[]', space=smem, size = 0x4, offset = 0x4, fixed_abs, tag = 'smem constant byte address 0x4 - core index']
  #allocation1 [shape = 'u32[72,128]{1,0:T(1,128)}', space=vmem, size = 0x9000, scoped, tag = 'internal scratch']
  %s0 = inlined_call_operand.vmem [shape: f32[2,4,256], index: 0, kind: input, shape index: {}]
  %s1 = inlined_call_operand.vmem [shape: f32[4,36], index: 1, kind: input, shape index: {}]
  %s2 = inlined_call_operand.vmem [shape: f32[4,9], index: 2, kind: input, shape index: {}]
  %s3 = inlined_call_operand.vmem [shape: f32[2,4,256], index: 3, kind: output, shape index: {}]
  %s4 = sld [smem:[#allocation0]]
  $region22: #{segmenter_forward.1} parent=0
    _
  %s6 = ssub.s32 1, %s4
  %s7 = scalar_select 0, %s6, %s4
  // Predicated region
  $region2: #{segmenter_forward.1} parent=0 // pred_check
    _
  $region3: #{segmenter_forward.1} parent=0 // pred_check_branch
    %9 = sbr.rel (0) target = $region5
  $region4: #{segmenter_forward.1} parent=0 // pred_region
    _
  $region5: #{segmenter_forward.1} parent=0 // pred_fallthru
    _
  // Predicated region
  $region6: #{segmenter_forward.1} parent=0 // pred_check
    _
  $region7: #{segmenter_forward.1} parent=0 // pred_check_branch
    %11 = sbr.rel (0) target = $region9
  $region8: #{segmenter_forward.1} parent=0 // pred_region
    _
  $region9: #{segmenter_forward.1} parent=0 // pred_fallthru
    _
  // Predicated region
  $region10: #{segmenter_forward.1} parent=0 // pred_check
    _
  $region11: #{segmenter_forward.1} parent=0 // pred_check_branch
    %13 = sbr.rel (0) target = $region13
  $region12: #{segmenter_forward.1} parent=0 // pred_region
    _
  $region13: #{segmenter_forward.1} parent=0 // pred_fallthru
    _
  %v14 = vld [vmem:[%s2] sm:$0xf]
  %v15 = vld [vmem:[%s0] sm:$0xff]
  %v16 = vmax.f32 %v15, 0.0
  %s17 = scalar_lea.vmem %s0, 8
  %v18 = vld [vmem:[%s17] sm:$0xff]
  %v19 = vmax.f32 %v18, 0.0
  %21 = vst [vmem:[#allocation1] ss:$2 sm:$0xff] %v16
  %v22 = vld.sshfl [vmem:[#allocation1] sm:$0xff pattern:$0x75316420]
  %v23 = vld.sshfl [vmem:[#allocation1 + $0x8] sm:$0xff pattern:$0x75316420]
  %27 = vst [vmem:[#allocation1] ss:$2 sm:$0xff] %v19
  %v28 = vld.sshfl [vmem:[#allocation1] sm:$0xff pattern:$0x75316420]
  %v29 = vld.sshfl [vmem:[#allocation1 + $0x8] sm:$0xff pattern:$0x75316420]
  %vm32 = vcmask 1043456
  %v33 = vsel %vm32, %v22, 0.0
  %v34 = vsel %vm32, %v23, 0.0
  %v35 = vadd.f32 %v33, %v34
  %v36 = vsel %vm32, %v28, 0.0
  %v37 = vadd.f32 %v35, %v36
  %v38 = vsel %vm32, %v29, 0.0
  %v39 = vadd.f32 %v37, %v38
  %40 = vadd.xlane.f32.xlu0 %v39
  %v41 = vpop.xlane.xlu0 %40
  %v42 = vrcp.pop 512.0
  %v43 = vmul.f32 512.0, %v42
  %v44 = vsub.f32 1.0, %v43
  %v45 = vmul.f32 %v42, %v44
  %v46 = vadd.f32 %v42, %v45
  %vm47 = vweird.f32 %v42
  %v48 = vsel %vm47, %v42, %v46
  %v49 = vmul.f32 %v41, %v48
  %v50 = vmul.f32 %v22, %v22
  %v51 = vmul.f32 %v23, %v23
  %v52 = vmul.f32 %v28, %v28
  %v53 = vmul.f32 %v29, %v29
  %v54 = vsel %vm32, %v50, 0.0
  %v55 = vsel %vm32, %v51, 0.0
  %v56 = vadd.f32 %v54, %v55
  %v57 = vsel %vm32, %v52, 0.0
  %v58 = vadd.f32 %v56, %v57
  %v59 = vsel %vm32, %v53, 0.0
  %v60 = vadd.f32 %v58, %v59
  %61 = vadd.xlane.f32.xlu0 %v60
  %v62 = vpop.xlane.xlu0 %61
  %v63 = vmul.f32 %v62, %v48
  %v64 = vmul.f32 %v49, %v49
  %v65 = vsub.f32 %v63, %v64
  %v66 = vadd.f32 %v65, 1e-05
  %v67 = vrsqrt.pop %v66
  %v68 = vmul.f32 %v67, %v66
  %v69 = vmul.f32 %v68, %v67
  %v70 = vmul.f32 0.5, %v69
  %v71 = vsub.f32 1.5, %v70
  %v72 = vmul.f32 %v67, %v71
  %vm73 = vweird.f32 %v66
  %vm74 = vweird.f32 %v67
  %vm75 = vmor %vm73, %vm74
  %v76 = vsel %vm75, %v67, %v72
  %v77 = vmul.f32 %v76, %v14
  %79 = vset.pattern.permute.xlu0 0
  %80 = vperm.xlu0 %79, %v77
  %v81 = vpop.permute.xlu0 %80
  %v83 = vmul.f32 %v22, %v81
  %v84 = vmul.f32 %v23, %v81
  %v85 = vmul.f32 %v28, %v81
  %v86 = vmul.f32 %v29, %v81
  %v87 = vmul.f32 %v49, %v77
  %89 = vrot.lane.b32.xlu0 %v87, 1
  %v90 = vpop.permute.xlu0 %89
  %v92 = vsub.f32 %v14, %v90
  %94 = vset.pattern.permute.xlu0 1
  %95 = vperm.xlu0 %94, %v92
  %v96 = vpop.permute.xlu0 %95
  %v98 = vadd.f32 %v83, %v96
  %v99 = vadd.f32 %v84, %v96
  %v100 = vadd.f32 %v85, %v96
  %v101 = vadd.f32 %v86, %v96
  %v102 = vlaneseq
  %v103 = vand.u32 %v102, 127
  %v104 = vadd.s32 %v103, 128
  %v105 = vadd.s32 %v103, 256
  %v106 = vadd.s32 %v103, 384
  %v107 = vand.u32 %v103, 15
  %v108 = vand.u32 %v104, 15
  %v109 = vand.u32 %v105, 15
  %v110 = vand.u32 %v106, 15
  %v111 = vshra.s32 %v103, 4
  %v112 = vshra.s32 %v104, 4
  %v113 = vshra.s32 %v105, 4
  %v114 = vshra.s32 %v106, 4
  %v115 = vand.u32 %v111, 15
  %v116 = vand.u32 %v112, 15
  %v117 = vand.u32 %v113, 15
  %v118 = vand.u32 %v114, 15
  %v119 = vadd.s32 %v115, 4294967295
  %v120 = vadd.s32 %v116, 4294967295
  %v121 = vadd.s32 %v117, 4294967295
  %v122 = vadd.s32 %v118, 4294967295
  %vm123 = vcmp.ge.s32.totalorder %v119, 0
  %vm124 = vcmp.ge.s32.totalorder %v120, 0
  %vm125 = vcmp.ge.s32.totalorder %v121, 0
  %vm126 = vcmp.ge.s32.totalorder %v122, 0
  %vm127 = vcmp.lt.s32.totalorder %v119, 16
  %vm128 = vcmp.lt.s32.totalorder %v120, 16
  %vm129 = vcmp.lt.s32.totalorder %v121, 16
  %vm130 = vcmp.lt.s32.totalorder %v122, 16
  %vm131 = vmand %vm123, %vm127
  %vm132 = vmand %vm124, %vm128
  %vm133 = vmand %vm125, %vm129
  %vm134 = vmand %vm126, %vm130
  %v135 = vadd.s32 %v107, 4294967295
  %v136 = vadd.s32 %v108, 4294967295
  %v137 = vadd.s32 %v109, 4294967295
  %v138 = vadd.s32 %v110, 4294967295
  %vm139 = vcmp.ge.s32.totalorder %v135, 0
  %vm140 = vcmp.ge.s32.totalorder %v136, 0
  %vm141 = vcmp.ge.s32.totalorder %v137, 0
  %vm142 = vcmp.ge.s32.totalorder %v138, 0
  %vm143 = vmand %vm131, %vm139
  %vm144 = vmand %vm132, %vm140
  %vm145 = vmand %vm133, %vm141
  %vm146 = vmand %vm134, %vm142
  %vm147 = vcmp.lt.s32.totalorder %v135, 16
  %vm148 = vcmp.lt.s32.totalorder %v136, 16
  %vm149 = vcmp.lt.s32.totalorder %v137, 16
  %vm150 = vcmp.lt.s32.totalorder %v138, 16
  %vm151 = vmand %vm143, %vm147
  %vm152 = vmand %vm144, %vm148
  %vm153 = vmand %vm145, %vm149
  %vm154 = vmand %vm146, %vm150
  %v155 = vsel %vm151, 1, 0
  %v156 = vsel %vm152, 1, 0
  %v157 = vsel %vm153, 1, 0
  %v158 = vsel %vm154, 1, 0
  %v159 = vcvt.s32.f32 %v155
  %v160 = vcvt.s32.f32 %v156
  %v161 = vcvt.s32.f32 %v157
  %v162 = vcvt.s32.f32 %v158
  %163 = vrot.lane.b32.xlu0 %v98, 17
  %v164 = vpop.permute.xlu0 %163
  %165 = vrot.lane.b32.xlu0 %v99, 17
  %v166 = vpop.permute.xlu0 %165
  %167 = vrot.lane.b32.xlu0 %v100, 17
  %v168 = vpop.permute.xlu0 %167
  %169 = vrot.lane.b32.xlu0 %v101, 17
  %v170 = vpop.permute.xlu0 %169
  %vm171 = vcmp.lt.s32.totalorder %v103, 17
  %v172 = vsel %vm171, %v168, %v170
  %v173 = vsel %vm171, %v166, %v168
  %v174 = vsel %vm171, %v164, %v166
  %v175 = vsel %vm171, %v170, %v164
  %v176 = vmul.f32 %v175, %v159
  %v177 = vmul.f32 %v174, %v160
  %v178 = vmul.f32 %v173, %v161
  %v179 = vmul.f32 %v172, %v162
  %vm180 = vcmp.ge.s32.totalorder %v107, 0
  %vm181 = vcmp.ge.s32.totalorder %v108, 0
  %vm182 = vcmp.ge.s32.totalorder %v109, 0
  %vm183 = vcmp.ge.s32.totalorder %v110, 0
  %vm184 = vmand %vm131, %vm180
  %vm185 = vmand %vm132, %vm181
  %vm186 = vmand %vm133, %vm182
  %vm187 = vmand %vm134, %vm183
  %vm188 = vcmp.lt.s32.totalorder %v107, 16
  %vm189 = vcmp.lt.s32.totalorder %v108, 16
  %vm190 = vcmp.lt.s32.totalorder %v109, 16
  %vm191 = vcmp.lt.s32.totalorder %v110, 16
  %vm192 = vmand %vm184, %vm188
  %vm193 = vmand %vm185, %vm189
  %vm194 = vmand %vm186, %vm190
  %vm195 = vmand %vm187, %vm191
  %v196 = vsel %vm192, 1, 0
  %v197 = vsel %vm193, 1, 0
  %v198 = vsel %vm194, 1, 0
  %v199 = vsel %vm195, 1, 0
  %v200 = vcvt.s32.f32 %v196
  %v201 = vcvt.s32.f32 %v197
  %v202 = vcvt.s32.f32 %v198
  %v203 = vcvt.s32.f32 %v199
  %204 = vrot.lane.b32.xlu0 %v98, 16
  %v205 = vpop.permute.xlu0 %204
  %206 = vrot.lane.b32.xlu0 %v99, 16
  %v207 = vpop.permute.xlu0 %206
  %208 = vrot.lane.b32.xlu0 %v100, 16
  %v209 = vpop.permute.xlu0 %208
  %210 = vrot.lane.b32.xlu0 %v101, 16
  %v211 = vpop.permute.xlu0 %210
  %vm212 = vcmp.lt.s32.totalorder %v103, 16
  %v213 = vsel %vm212, %v209, %v211
  %v214 = vsel %vm212, %v207, %v209
  %v215 = vsel %vm212, %v205, %v207
  %v216 = vsel %vm212, %v211, %v205
  %v217 = vmul.f32 %v216, %v200
  %v218 = vmul.f32 %v215, %v201
  %v219 = vmul.f32 %v214, %v202
  %v220 = vmul.f32 %v213, %v203
  %v221 = vadd.s32 %v107, 1
  %v222 = vadd.s32 %v108, 1
  %v223 = vadd.s32 %v109, 1
  %v224 = vadd.s32 %v110, 1
  %vm225 = vcmp.ge.s32.totalorder %v221, 0
  %vm226 = vcmp.ge.s32.totalorder %v222, 0
  %vm227 = vcmp.ge.s32.totalorder %v223, 0
  %vm228 = vcmp.ge.s32.totalorder %v224, 0
  %vm229 = vmand %vm131, %vm225
  %vm230 = vmand %vm132, %vm226
  %vm231 = vmand %vm133, %vm227
  %vm232 = vmand %vm134, %vm228
  %vm233 = vcmp.lt.s32.totalorder %v221, 16
  %vm234 = vcmp.lt.s32.totalorder %v222, 16
  %vm235 = vcmp.lt.s32.totalorder %v223, 16
  %vm236 = vcmp.lt.s32.totalorder %v224, 16
  %vm237 = vmand %vm229, %vm233
  %vm238 = vmand %vm230, %vm234
  %vm239 = vmand %vm231, %vm235
  %vm240 = vmand %vm232, %vm236
  %v241 = vsel %vm237, 1, 0
  %v242 = vsel %vm238, 1, 0
  %v243 = vsel %vm239, 1, 0
  %v244 = vsel %vm240, 1, 0
  %v245 = vcvt.s32.f32 %v241
  %v246 = vcvt.s32.f32 %v242
  %v247 = vcvt.s32.f32 %v243
  %v248 = vcvt.s32.f32 %v244
  %249 = vrot.lane.b32.xlu0 %v98, 15
  %v250 = vpop.permute.xlu0 %249
  %251 = vrot.lane.b32.xlu0 %v99, 15
  %v252 = vpop.permute.xlu0 %251
  %253 = vrot.lane.b32.xlu0 %v100, 15
  %v254 = vpop.permute.xlu0 %253
  %255 = vrot.lane.b32.xlu0 %v101, 15
  %v256 = vpop.permute.xlu0 %255
  %vm257 = vcmp.lt.s32.totalorder %v103, 15
  %v258 = vsel %vm257, %v254, %v256
  %v259 = vsel %vm257, %v252, %v254
  %v260 = vsel %vm257, %v250, %v252
  %v261 = vsel %vm257, %v256, %v250
  %v262 = vmul.f32 %v261, %v245
  %v263 = vmul.f32 %v260, %v246
  %v264 = vmul.f32 %v259, %v247
  %v265 = vmul.f32 %v258, %v248
  %vm266 = vcmp.ge.s32.totalorder %v115, 0
  %vm267 = vcmp.ge.s32.totalorder %v116, 0
  %vm268 = vcmp.ge.s32.totalorder %v117, 0
  %vm269 = vcmp.ge.s32.totalorder %v118, 0
  %vm270 = vcmp.lt.s32.totalorder %v115, 16
  %vm271 = vcmp.lt.s32.totalorder %v116, 16
  %vm272 = vcmp.lt.s32.totalorder %v117, 16
  %vm273 = vcmp.lt.s32.totalorder %v118, 16
  %vm274 = vmand %vm266, %vm270
  %vm275 = vmand %vm267, %vm271
  %vm276 = vmand %vm268, %vm272
  %vm277 = vmand %vm269, %vm273
  %vm278 = vmand %vm274, %vm139
  %vm279 = vmand %vm275, %vm140
  %vm280 = vmand %vm276, %vm141
  %vm281 = vmand %vm277, %vm142
  %vm282 = vmand %vm278, %vm147
  %vm283 = vmand %vm279, %vm148
  %vm284 = vmand %vm280, %vm149
  %vm285 = vmand %vm281, %vm150
  %v286 = vsel %vm282, 1, 0
  %v287 = vsel %vm283, 1, 0
  %v288 = vsel %vm284, 1, 0
  %v289 = vsel %vm285, 1, 0
  %v290 = vcvt.s32.f32 %v286
  %v291 = vcvt.s32.f32 %v287
  %v292 = vcvt.s32.f32 %v288
  %v293 = vcvt.s32.f32 %v289
  %294 = vrot.lane.b32.xlu0 %v98, 1
  %v295 = vpop.permute.xlu0 %294
  %296 = vrot.lane.b32.xlu0 %v99, 1
  %v297 = vpop.permute.xlu0 %296
  %298 = vrot.lane.b32.xlu0 %v100, 1
  %v299 = vpop.permute.xlu0 %298
  %300 = vrot.lane.b32.xlu0 %v101, 1
  %v301 = vpop.permute.xlu0 %300
  %vm302 = vcmp.lt.s32.totalorder %v103, 1
  %v303 = vsel %vm302, %v299, %v301
  %v304 = vsel %vm302, %v297, %v299
  %v305 = vsel %vm302, %v295, %v297
  %v306 = vsel %vm302, %v301, %v295
  %v307 = vmul.f32 %v306, %v290
  %v308 = vmul.f32 %v305, %v291
  %v309 = vmul.f32 %v304, %v292
  %v310 = vmul.f32 %v303, %v293
  %vm311 = vmand %vm274, %vm180
  %vm312 = vmand %vm275, %vm181
  %vm313 = vmand %vm276, %vm182
  %vm314 = vmand %vm277, %vm183
  %vm315 = vmand %vm311, %vm188
  %vm316 = vmand %vm312, %vm189
  %vm317 = vmand %vm313, %vm190
  %vm318 = vmand %vm314, %vm191
  %v319 = vsel %vm315, 1, 0
  %v320 = vsel %vm316, 1, 0
  %v321 = vsel %vm317, 1, 0
  %v322 = vsel %vm318, 1, 0
  %v323 = vcvt.s32.f32 %v319
  %v324 = vcvt.s32.f32 %v320
  %v325 = vcvt.s32.f32 %v321
  %v326 = vcvt.s32.f32 %v322
  %v327 = vmul.f32 %v98, %v323
  %v328 = vmul.f32 %v99, %v324
  %v329 = vmul.f32 %v100, %v325
  %v330 = vmul.f32 %v101, %v326
  %vm331 = vmand %vm274, %vm225
  %vm332 = vmand %vm275, %vm226
  %vm333 = vmand %vm276, %vm227
  %vm334 = vmand %vm277, %vm228
  %vm335 = vmand %vm331, %vm233
  %vm336 = vmand %vm332, %vm234
  %vm337 = vmand %vm333, %vm235
  %vm338 = vmand %vm334, %vm236
  %v339 = vsel %vm335, 1, 0
  %v340 = vsel %vm336, 1, 0
  %v341 = vsel %vm337, 1, 0
  %v342 = vsel %vm338, 1, 0
  %v343 = vcvt.s32.f32 %v339
  %v344 = vcvt.s32.f32 %v340
  %v345 = vcvt.s32.f32 %v341
  %v346 = vcvt.s32.f32 %v342
  %347 = vrot.lane.b32.xlu0 %v98, 127
  %v348 = vpop.permute.xlu0 %347
  %349 = vrot.lane.b32.xlu0 %v99, 127
  %v350 = vpop.permute.xlu0 %349
  %351 = vrot.lane.b32.xlu0 %v100, 127
  %v352 = vpop.permute.xlu0 %351
  %353 = vrot.lane.b32.xlu0 %v101, 127
  %v354 = vpop.permute.xlu0 %353
  %vm355 = vcmp.lt.s32.totalorder %v103, 127
  %v356 = vsel %vm355, %v352, %v354
  %v357 = vsel %vm355, %v350, %v352
  %v358 = vsel %vm355, %v348, %v350
  %v359 = vsel %vm355, %v354, %v348
  %v360 = vmul.f32 %v358, %v343
  %v361 = vmul.f32 %v357, %v344
  %v362 = vmul.f32 %v356, %v345
  %v363 = vmul.f32 %v359, %v346
  %v364 = vadd.s32 %v115, 1
  %v365 = vadd.s32 %v116, 1
  %v366 = vadd.s32 %v117, 1
  %v367 = vadd.s32 %v118, 1
  %vm368 = vcmp.ge.s32.totalorder %v364, 0
  %vm369 = vcmp.ge.s32.totalorder %v365, 0
  %vm370 = vcmp.ge.s32.totalorder %v366, 0
  %vm371 = vcmp.ge.s32.totalorder %v367, 0
  %vm372 = vcmp.lt.s32.totalorder %v364, 16
  %vm373 = vcmp.lt.s32.totalorder %v365, 16
  %vm374 = vcmp.lt.s32.totalorder %v366, 16
  %vm375 = vcmp.lt.s32.totalorder %v367, 16
  %vm376 = vmand %vm368, %vm372
  %vm377 = vmand %vm369, %vm373
  %vm378 = vmand %vm370, %vm374
  %vm379 = vmand %vm371, %vm375
  %vm380 = vmand %vm376, %vm139
  %vm381 = vmand %vm377, %vm140
  %vm382 = vmand %vm378, %vm141
  %vm383 = vmand %vm379, %vm142
  %vm384 = vmand %vm380, %vm147
  %vm385 = vmand %vm381, %vm148
  %vm386 = vmand %vm382, %vm149
  %vm387 = vmand %vm383, %vm150
  %v388 = vsel %vm384, 1, 0
  %v389 = vsel %vm385, 1, 0
  %v390 = vsel %vm386, 1, 0
  %v391 = vsel %vm387, 1, 0
  %v392 = vcvt.s32.f32 %v388
  %v393 = vcvt.s32.f32 %v389
  %v394 = vcvt.s32.f32 %v390
  %v395 = vcvt.s32.f32 %v391
  %396 = vrot.lane.b32.xlu0 %v98, 113
  %v397 = vpop.permute.xlu0 %396
  %398 = vrot.lane.b32.xlu0 %v99, 113
  %v399 = vpop.permute.xlu0 %398
  %400 = vrot.lane.b32.xlu0 %v100, 113
  %v401 = vpop.permute.xlu0 %400
  %402 = vrot.lane.b32.xlu0 %v101, 113
  %v403 = vpop.permute.xlu0 %402
  %vm404 = vcmp.lt.s32.totalorder %v103, 113
  %v405 = vsel %vm404, %v401, %v403
  %v406 = vsel %vm404, %v399, %v401
  %v407 = vsel %vm404, %v397, %v399
  %v408 = vsel %vm404, %v403, %v397
  %v409 = vmul.f32 %v407, %v392
  %v410 = vmul.f32 %v406, %v393
  %v411 = vmul.f32 %v405, %v394
  %v412 = vmul.f32 %v408, %v395
  %vm413 = vmand %vm376, %vm180
  %vm414 = vmand %vm377, %vm181
  %vm415 = vmand %vm378, %vm182
  %vm416 = vmand %vm379, %vm183
  %vm417 = vmand %vm413, %vm188
  %vm418 = vmand %vm414, %vm189
  %vm419 = vmand %vm415, %vm190
  %vm420 = vmand %vm416, %vm191
  %v421 = vsel %vm417, 1, 0
  %v422 = vsel %vm418, 1, 0
  %v423 = vsel %vm419, 1, 0
  %v424 = vsel %vm420, 1, 0
  %v425 = vcvt.s32.f32 %v421
  %v426 = vcvt.s32.f32 %v422
  %v427 = vcvt.s32.f32 %v423
  %v428 = vcvt.s32.f32 %v424
  %429 = vrot.lane.b32.xlu0 %v98, 112
  %v430 = vpop.permute.xlu0 %429
  %431 = vrot.lane.b32.xlu0 %v99, 112
  %v432 = vpop.permute.xlu0 %431
  %433 = vrot.lane.b32.xlu0 %v100, 112
  %v434 = vpop.permute.xlu0 %433
  %435 = vrot.lane.b32.xlu0 %v101, 112
  %v436 = vpop.permute.xlu0 %435
  %vm437 = vcmp.lt.s32.totalorder %v103, 112
  %v438 = vsel %vm437, %v434, %v436
  %v439 = vsel %vm437, %v432, %v434
  %v440 = vsel %vm437, %v430, %v432
  %v441 = vsel %vm437, %v436, %v430
  %v442 = vmul.f32 %v440, %v425
  %v443 = vmul.f32 %v439, %v426
  %v444 = vmul.f32 %v438, %v427
  %v445 = vmul.f32 %v441, %v428
  %vm446 = vmand %vm376, %vm225
  %vm447 = vmand %vm377, %vm226
  %vm448 = vmand %vm378, %vm227
  %vm449 = vmand %vm379, %vm228
  %vm450 = vmand %vm446, %vm233
  %vm451 = vmand %vm447, %vm234
  %vm452 = vmand %vm448, %vm235
  %vm453 = vmand %vm449, %vm236
  %v454 = vsel %vm450, 1, 0
  %v455 = vsel %vm451, 1, 0
  %v456 = vsel %vm452, 1, 0
  %v457 = vsel %vm453, 1, 0
  %v458 = vcvt.s32.f32 %v454
  %v459 = vcvt.s32.f32 %v455
  %v460 = vcvt.s32.f32 %v456
  %v461 = vcvt.s32.f32 %v457
  %462 = vrot.lane.b32.xlu0 %v98, 111
  %v463 = vpop.permute.xlu0 %462
  %464 = vrot.lane.b32.xlu0 %v99, 111
  %v465 = vpop.permute.xlu0 %464
  %466 = vrot.lane.b32.xlu0 %v100, 111
  %v467 = vpop.permute.xlu0 %466
  %468 = vrot.lane.b32.xlu0 %v101, 111
  %v469 = vpop.permute.xlu0 %468
  %vm470 = vcmp.lt.s32.totalorder %v103, 111
  %v471 = vsel %vm470, %v467, %v469
  %v472 = vsel %vm470, %v465, %v467
  %v473 = vsel %vm470, %v463, %v465
  %v474 = vsel %vm470, %v469, %v463
  %v475 = vmul.f32 %v473, %v458
  %v476 = vmul.f32 %v472, %v459
  %v477 = vmul.f32 %v471, %v460
  %v478 = vmul.f32 %v474, %v461
  %v483 = vrot.slane %v217, 4
  %v484 = vrot.slane %v218, 4
  %v485 = vrot.slane %v219, 4
  %v486 = vrot.slane %v220, 4
  %v495 = vrot.slane %v307, 4
  %v496 = vrot.slane %v308, 4
  %v497 = vrot.slane %v309, 4
  %v498 = vrot.slane %v310, 4
  %v507 = vrot.slane %v360, 4
  %v508 = vrot.slane %v361, 4
  %v509 = vrot.slane %v362, 4
  %v510 = vrot.slane %v363, 4
  %v519 = vrot.slane %v442, 4
  %v520 = vrot.slane %v443, 4
  %v521 = vrot.slane %v444, 4
  %v522 = vrot.slane %v445, 4
  %v527 = vsel %vm32, %v176, %v483
  %v528 = vsel %vm32, %v177, %v484
  %v529 = vsel %vm32, %v178, %v485
  %v530 = vsel %vm32, %v179, %v486
  %v531 = vsel %vm32, %v262, %v495
  %v532 = vsel %vm32, %v263, %v496
  %v533 = vsel %vm32, %v264, %v497
  %v534 = vsel %vm32, %v265, %v498
  %v535 = vsel %vm32, %v327, %v507
  %v536 = vsel %vm32, %v328, %v508
  %v537 = vsel %vm32, %v329, %v509
  %v538 = vsel %vm32, %v330, %v510
  %v539 = vsel %vm32, %v409, %v519
  %v540 = vsel %vm32, %v410, %v520
  %v541 = vsel %vm32, %v411, %v521
  %v542 = vsel %vm32, %v412, %v522
  %v543 = vld [vmem:[%s1] sm:$0xf]
  %vm544 = vcmask 293888
  %v546 = vsel %vm544, %v543, 0
  %v549 = vsel %vm32, %v475, 0
  %v552 = vsel %vm32, %v476, 0
  %v555 = vsel %vm32, %v477, 0
  %v558 = vsel %vm32, %v478, 0
  %560 = vmatpush.msra.mxu0 0.0
  %561 = vmatpush.msra.mxu0 0.0
  %562 = vmatpush.msra.mxu0 0.0
  %563 = vmatpush.msra.mxu0 0.0
  %564 = vmatpush.msra.mxu0 0.0
  %565 = vmatpush.msra.mxu0 0.0
  %566 = vmatpush.msra.mxu0 0.0
  %567 = vmatpush.msra.mxu0 0.0
  %568 = vmatpush.msra.mxu0 0.0
  %569 = vmatpush.msra.mxu0 0.0
  %570 = vmatpush.msra.mxu0 0.0
  %571 = vmatpush.msra.mxu0 %v549
  %572 = vmatpush.msra.mxu0 %v539
  %573 = vmatpush.msra.mxu0 %v535
  %574 = vmatpush.msra.mxu0 %v531
  %575 = vmatpush.msra.mxu0 %v527
  %576 = vmatmul.f32.gmra.mxu0 %v546
  %v577 = vpop.f32.mrf.mxu0
  %v578 = vadd.f32 0.0, %v577
  %579 = vdwg.mxu0
  %580 = vmatpush.msra.mxu0 0.0
  %581 = vmatpush.msra.mxu0 0.0
  %582 = vmatpush.msra.mxu0 0.0
  %583 = vmatpush.msra.mxu0 0.0
  %584 = vmatpush.msra.mxu0 0.0
  %585 = vmatpush.msra.mxu0 0.0
  %586 = vmatpush.msra.mxu0 0.0
  %587 = vmatpush.msra.mxu0 0.0
  %588 = vmatpush.msra.mxu0 0.0
  %589 = vmatpush.msra.mxu0 0.0
  %590 = vmatpush.msra.mxu0 0.0
  %591 = vmatpush.msra.mxu0 %v552
  %592 = vmatpush.msra.mxu0 %v540
  %593 = vmatpush.msra.mxu0 %v536
  %594 = vmatpush.msra.mxu0 %v532
  %595 = vmatpush.msra.mxu0 %v528
  %596 = vmatmul.f32.gmra.mxu0 %v546
  %v597 = vpop.f32.mrf.mxu0
  %v598 = vadd.f32 0.0, %v597
  %599 = vdwg.mxu0
  %600 = vmatpush.msra.mxu0 0.0
  %601 = vmatpush.msra.mxu0 0.0
  %602 = vmatpush.msra.mxu0 0.0
  %603 = vmatpush.msra.mxu0 0.0
  %604 = vmatpush.msra.mxu0 0.0
  %605 = vmatpush.msra.mxu0 0.0
  %606 = vmatpush.msra.mxu0 0.0
  %607 = vmatpush.msra.mxu0 0.0
  %608 = vmatpush.msra.mxu0 0.0
  %609 = vmatpush.msra.mxu0 0.0
  %610 = vmatpush.msra.mxu0 0.0
  %611 = vmatpush.msra.mxu0 %v555
  %612 = vmatpush.msra.mxu0 %v541
  %613 = vmatpush.msra.mxu0 %v537
  %614 = vmatpush.msra.mxu0 %v533
  %615 = vmatpush.msra.mxu0 %v529
  %616 = vmatmul.f32.gmra.mxu0 %v546
  %v617 = vpop.f32.mrf.mxu0
  %v618 = vadd.f32 0.0, %v617
  %619 = vdwg.mxu0
  %620 = vmatpush.msra.mxu0 0.0
  %621 = vmatpush.msra.mxu0 0.0
  %622 = vmatpush.msra.mxu0 0.0
  %623 = vmatpush.msra.mxu0 0.0
  %624 = vmatpush.msra.mxu0 0.0
  %625 = vmatpush.msra.mxu0 0.0
  %626 = vmatpush.msra.mxu0 0.0
  %627 = vmatpush.msra.mxu0 0.0
  %628 = vmatpush.msra.mxu0 0.0
  %629 = vmatpush.msra.mxu0 0.0
  %630 = vmatpush.msra.mxu0 0.0
  %631 = vmatpush.msra.mxu0 %v558
  %632 = vmatpush.msra.mxu0 %v542
  %633 = vmatpush.msra.mxu0 %v538
  %634 = vmatpush.msra.mxu0 %v534
  %635 = vmatpush.msra.mxu0 %v530
  %636 = vmatmul.f32.gmra.mxu0 %v546
  %v637 = vpop.f32.mrf.mxu0
  %v638 = vadd.f32 0.0, %v637
  %639 = vdwg.mxu0
  %v640 = vmax.f32 %v578, 0.0
  %v641 = vmax.f32 %v598, 0.0
  %v642 = vmax.f32 %v618, 0.0
  %v643 = vmax.f32 %v638, 0.0
  %v644 = vsel %vm32, %v640, 0.0
  %v645 = vsel %vm32, %v641, 0.0
  %v646 = vadd.f32 %v644, %v645
  %v647 = vsel %vm32, %v642, 0.0
  %v648 = vadd.f32 %v646, %v647
  %v649 = vsel %vm32, %v643, 0.0
  %v650 = vadd.f32 %v648, %v649
  %651 = vadd.xlane.f32.xlu0 %v650
  %v652 = vpop.xlane.xlu0 %651
  %v653 = vmul.f32 %v652, %v48
  %v654 = vmul.f32 %v640, %v640
  %v655 = vmul.f32 %v641, %v641
  %v656 = vmul.f32 %v642, %v642
  %v657 = vmul.f32 %v643, %v643
  %v658 = vsel %vm32, %v654, 0.0
  %v659 = vsel %vm32, %v655, 0.0
  %v660 = vadd.f32 %v658, %v659
  %v661 = vsel %vm32, %v656, 0.0
  %v662 = vadd.f32 %v660, %v661
  %v663 = vsel %vm32, %v657, 0.0
  %v664 = vadd.f32 %v662, %v663
  %665 = vadd.xlane.f32.xlu0 %v664
  %v666 = vpop.xlane.xlu0 %665
  %v667 = vmul.f32 %v666, %v48
  %v668 = vmul.f32 %v653, %v653
  %v669 = vsub.f32 %v667, %v668
  %v670 = vadd.f32 %v669, 1e-05
  %v671 = vrsqrt.pop %v670
  %v672 = vmul.f32 %v671, %v670
  %v673 = vmul.f32 %v672, %v671
  %v674 = vmul.f32 0.5, %v673
  %v675 = vsub.f32 1.5, %v674
  %v676 = vmul.f32 %v671, %v675
  %vm677 = vweird.f32 %v670
  %vm678 = vweird.f32 %v671
  %vm679 = vmor %vm677, %vm678
  %v680 = vsel %vm679, %v671, %v676
  %v681 = vmul.f32 %v680, %v14
  %v682 = vmul.f32 %v653, %v681
  %684 = vrot.lane.b32.xlu0 %v682, 1
  %v685 = vpop.permute.xlu0 %684
  %v687 = vsub.f32 %v14, %v685
  %v688 = vlaneseq
  %v689 = vshrl.u32 %v688, 7
  %vm690 = vcmp.eq.s32.totalorder %v689, %v103
  %v691 = vsel %vm690, 1, 0
  %v692 = vcvt.s32.f32 %v691
  %694 = vset.pattern.permute.xlu0 2
  %695 = vperm.xlu0 %694, %v681
  %v696 = vpop.permute.xlu0 %695
  %v698 = vmul.f32 %v692, %v696
  %700 = vrot.lane.b32.xlu0 %v14, 124
  %v701 = vpop.permute.xlu0 %700
  %vm702 = vcmask 31744
  %v703 = vsel %vm702, %v701, 0
  %v706 = vsel %vm32, %v698, 0
  %708 = vmatpush.msra.mxu0 0.0
  %709 = vmatpush.msra.mxu0 0.0
  %710 = vmatpush.msra.mxu0 0.0
  %711 = vmatpush.msra.mxu0 0.0
  %712 = vmatpush.msra.mxu0 0.0
  %713 = vmatpush.msra.mxu0 0.0
  %714 = vmatpush.msra.mxu0 0.0
  %715 = vmatpush.msra.mxu0 0.0
  %716 = vmatpush.msra.mxu0 0.0
  %717 = vmatpush.msra.mxu0 0.0
  %718 = vmatpush.msra.mxu0 0.0
  %719 = vmatpush.msra.mxu0 0.0
  %720 = vmatpush.msra.mxu0 0.0
  %721 = vmatpush.msra.mxu0 0.0
  %722 = vmatpush.msra.mxu0 0.0
  %723 = vmatpush.msra.mxu0 %v706
  %724 = vmatmul.f32.gmra.mxu0 %v703
  %v725 = vpop.f32.mrf.mxu0
  %v726 = vadd.f32 0.0, %v725
  %727 = vdwg.mxu0
  %729 = vset.pattern.permute.xlu0 3
  %730 = vperm.xlu0 %729, %v687
  %v731 = vpop.permute.xlu0 %730
  %v733 = vmul.f32 %v692, %v731
  %v735 = vsel %vm32, %v733, 0
  %737 = vmatpush.msra.mxu0 0.0
  %738 = vmatpush.msra.mxu0 0.0
  %739 = vmatpush.msra.mxu0 0.0
  %740 = vmatpush.msra.mxu0 0.0
  %741 = vmatpush.msra.mxu0 0.0
  %742 = vmatpush.msra.mxu0 0.0
  %743 = vmatpush.msra.mxu0 0.0
  %744 = vmatpush.msra.mxu0 0.0
  %745 = vmatpush.msra.mxu0 0.0
  %746 = vmatpush.msra.mxu0 0.0
  %747 = vmatpush.msra.mxu0 0.0
  %748 = vmatpush.msra.mxu0 0.0
  %749 = vmatpush.msra.mxu0 0.0
  %750 = vmatpush.msra.mxu0 0.0
  %751 = vmatpush.msra.mxu0 0.0
  %752 = vmatpush.msra.mxu0 %v735
  %753 = vmatmul.f32.gmra.mxu0 %v703
  %v754 = vpop.f32.mrf.mxu0
  %v755 = vadd.f32 0.0, %v754
  %756 = vdwg.mxu0
  %vm757 = vcmask 27648
  %v758 = vsel %vm757, %v755, 0.0
  %759 = vadd.xlane.f32.xlu0 %v758
  %v760 = vpop.xlane.xlu0 %759
  %v761 = vadd.f32 %v760, %v14
  %763 = vset.pattern.permute.xlu0 8
  %764 = vperm.xlu0 %763, %v761
  %v765 = vpop.permute.xlu0 %764
  %v768 = vsel %vm702, %v726, 0
  %v771 = vsel %vm32, %v640, 0
  %v774 = vsel %vm32, %v641, 0
  %v777 = vsel %vm32, %v642, 0
  %v780 = vsel %vm32, %v643, 0
  %782 = vmatpush.msra.mxu0 0.0
  %783 = vmatpush.msra.mxu0 0.0
  %784 = vmatpush.msra.mxu0 0.0
  %785 = vmatpush.msra.mxu0 0.0
  %786 = vmatpush.msra.mxu0 0.0
  %787 = vmatpush.msra.mxu0 0.0
  %788 = vmatpush.msra.mxu0 0.0
  %789 = vmatpush.msra.mxu0 0.0
  %790 = vmatpush.msra.mxu0 0.0
  %791 = vmatpush.msra.mxu0 0.0
  %792 = vmatpush.msra.mxu0 0.0
  %793 = vmatpush.msra.mxu0 0.0
  %794 = vmatpush.msra.mxu0 0.0
  %795 = vmatpush.msra.mxu0 0.0
  %796 = vmatpush.msra.mxu0 0.0
  %797 = vmatpush.msra.mxu0 %v771
  %798 = vmatmul.f32.gmra.mxu0 %v768
  %v799 = vpop.f32.mrf.mxu0
  %v800 = vadd.f32 %v765, %v799
  %801 = vdwg.mxu0
  %802 = vmatpush.msra.mxu0 0.0
  %803 = vmatpush.msra.mxu0 0.0
  %804 = vmatpush.msra.mxu0 0.0
  %805 = vmatpush.msra.mxu0 0.0
  %806 = vmatpush.msra.mxu0 0.0
  %807 = vmatpush.msra.mxu0 0.0
  %808 = vmatpush.msra.mxu0 0.0
  %809 = vmatpush.msra.mxu0 0.0
  %810 = vmatpush.msra.mxu0 0.0
  %811 = vmatpush.msra.mxu0 0.0
  %812 = vmatpush.msra.mxu0 0.0
  %813 = vmatpush.msra.mxu0 0.0
  %814 = vmatpush.msra.mxu0 0.0
  %815 = vmatpush.msra.mxu0 0.0
  %816 = vmatpush.msra.mxu0 0.0
  %817 = vmatpush.msra.mxu0 %v774
  %818 = vmatmul.f32.gmra.mxu0 %v768
  %v819 = vpop.f32.mrf.mxu0
  %v820 = vadd.f32 %v765, %v819
  %821 = vdwg.mxu0
  %822 = vmatpush.msra.mxu0 0.0
  %823 = vmatpush.msra.mxu0 0.0
  %824 = vmatpush.msra.mxu0 0.0
  %825 = vmatpush.msra.mxu0 0.0
  %826 = vmatpush.msra.mxu0 0.0
  %827 = vmatpush.msra.mxu0 0.0
  %828 = vmatpush.msra.mxu0 0.0
  %829 = vmatpush.msra.mxu0 0.0
  %830 = vmatpush.msra.mxu0 0.0
  %831 = vmatpush.msra.mxu0 0.0
  %832 = vmatpush.msra.mxu0 0.0
  %833 = vmatpush.msra.mxu0 0.0
  %834 = vmatpush.msra.mxu0 0.0
  %835 = vmatpush.msra.mxu0 0.0
  %836 = vmatpush.msra.mxu0 0.0
  %837 = vmatpush.msra.mxu0 %v777
  %838 = vmatmul.f32.gmra.mxu0 %v768
  %v839 = vpop.f32.mrf.mxu0
  %v840 = vadd.f32 %v765, %v839
  %841 = vdwg.mxu0
  %842 = vmatpush.msra.mxu0 0.0
  %843 = vmatpush.msra.mxu0 0.0
  %844 = vmatpush.msra.mxu0 0.0
  %845 = vmatpush.msra.mxu0 0.0
  %846 = vmatpush.msra.mxu0 0.0
  %847 = vmatpush.msra.mxu0 0.0
  %848 = vmatpush.msra.mxu0 0.0
  %849 = vmatpush.msra.mxu0 0.0
  %850 = vmatpush.msra.mxu0 0.0
  %851 = vmatpush.msra.mxu0 0.0
  %852 = vmatpush.msra.mxu0 0.0
  %853 = vmatpush.msra.mxu0 0.0
  %854 = vmatpush.msra.mxu0 0.0
  %855 = vmatpush.msra.mxu0 0.0
  %856 = vmatpush.msra.mxu0 0.0
  %857 = vmatpush.msra.mxu0 %v780
  %858 = vmatmul.f32.gmra.mxu0 %v768
  %v859 = vpop.f32.mrf.mxu0
  %v860 = vadd.f32 %v765, %v859
  %861 = vdwg.mxu0
  %v862 = vxor.u32 %v800, 2147483648
  %v863 = vxor.u32 %v820, 2147483648
  %v864 = vxor.u32 %v840, 2147483648
  %v865 = vxor.u32 %v860, 2147483648
  %v866 = vmul.f32 %v862, 1.442695
  %v867 = vpow.pop %v866
  %v868 = vmul.f32 %v863, 1.442695
  %v869 = vpow.pop %v868
  %v870 = vmul.f32 %v864, 1.442695
  %v871 = vpow.pop %v870
  %v872 = vmul.f32 %v865, 1.442695
  %v873 = vpow.pop %v872
  %v874 = vadd.f32 %v867, 1.0
  %v875 = vadd.f32 %v869, 1.0
  %v876 = vadd.f32 %v871, 1.0
  %v877 = vadd.f32 %v873, 1.0
  %v878 = vrcp.pop %v874
  %v879 = vmul.f32 %v874, %v878
  %v880 = vsub.f32 1.0, %v879
  %v881 = vmul.f32 %v878, %v880
  %v882 = vadd.f32 %v878, %v881
  %vm883 = vweird.f32 %v874
  %vm884 = vweird.f32 %v878
  %vm885 = vmor %vm883, %vm884
  %v886 = vsel %vm885, %v878, %v882
  %v887 = vand.u32 2147483647, %v874
  %vm888 = vcmp.eq.f32.partialorder %v887, 8.507059e+37
  %v889 = vand.u32 %v874, 2147483648
  %v890 = vor.u32 1.1754944e-38, %v889
  %v891 = vsel %vm888, %v890, %v886
  %v892 = vmul.f32 1.0, %v891
  %v893 = vrcp.pop %v875
  %v894 = vmul.f32 %v875, %v893
  %v895 = vsub.f32 1.0, %v894
  %v896 = vmul.f32 %v893, %v895
  %v897 = vadd.f32 %v893, %v896
  %vm898 = vweird.f32 %v875
  %vm899 = vweird.f32 %v893
  %vm900 = vmor %vm898, %vm899
  %v901 = vsel %vm900, %v893, %v897
  %v902 = vand.u32 2147483647, %v875
  %vm903 = vcmp.eq.f32.partialorder %v902, 8.507059e+37
  %v904 = vand.u32 %v875, 2147483648
  %v905 = vor.u32 1.1754944e-38, %v904
  %v906 = vsel %vm903, %v905, %v901
  %v907 = vmul.f32 1.0, %v906
  %v908 = vrcp.pop %v876
  %v909 = vmul.f32 %v876, %v908
  %v910 = vsub.f32 1.0, %v909
  %v911 = vmul.f32 %v908, %v910
  %v912 = vadd.f32 %v908, %v911
  %vm913 = vweird.f32 %v876
  %vm914 = vweird.f32 %v908
  %vm915 = vmor %vm913, %vm914
  %v916 = vsel %vm915, %v908, %v912
  %v917 = vand.u32 2147483647, %v876
  %vm918 = vcmp.eq.f32.partialorder %v917, 8.507059e+37
  %v919 = vand.u32 %v876, 2147483648
  %v920 = vor.u32 1.1754944e-38, %v919
  %v921 = vsel %vm918, %v920, %v916
  %v922 = vmul.f32 1.0, %v921
  %v923 = vrcp.pop %v877
  %v924 = vmul.f32 %v877, %v923
  %v925 = vsub.f32 1.0, %v924
  %v926 = vmul.f32 %v923, %v925
  %v927 = vadd.f32 %v923, %v926
  %vm928 = vweird.f32 %v877
  %vm929 = vweird.f32 %v923
  %vm930 = vmor %vm928, %vm929
  %v931 = vsel %vm930, %v923, %v927
  %v932 = vand.u32 2147483647, %v877
  %vm933 = vcmp.eq.f32.partialorder %v932, 8.507059e+37
  %v934 = vand.u32 %v877, 2147483648
  %v935 = vor.u32 1.1754944e-38, %v934
  %v936 = vsel %vm933, %v935, %v931
  %v937 = vmul.f32 1.0, %v936
  %v940 = vrot.slane %v907, 4
  %v941 = vsel %vm32, %v892, %v940
  %943 = vst [vmem:[%s3] sm:$0xff] %v941
  %v946 = vrot.slane %v937, 4
  %v947 = vsel %vm32, %v922, %v946
  %s949 = scalar_lea.vmem %s3, 8
  %950 = vst [vmem:[%s949] sm:$0xff] %v947
  // Predicated region
  $region14: #{segmenter_forward.1} parent=0 // pred_check
    _
  $region15: #{segmenter_forward.1} parent=0 // pred_check_branch
    %952 = sbr.rel (0) target = $region17
  $region16: #{segmenter_forward.1} parent=0 // pred_region
    _
  $region17: #{segmenter_forward.1} parent=0 // pred_fallthru
    _
  // Predicated region
  $region18: #{segmenter_forward.1} parent=0 // pred_check
    _
  $region19: #{segmenter_forward.1} parent=0 // pred_check_branch
    %954 = sbr.rel (0) target = $region21
  $region20: #{segmenter_forward.1} parent=0 // pred_region
    _
  $region21: #{segmenter_forward.1} parent=0 // pred_fallthru
    _

</llo_original>
